<compile_context>
chip_gen: v6e
topology: v6e:2x2x1
jax: 0.10.0
libtpu: 0.0.40
codegen_flags: <defaults>
</compile_context>

<pallas_src>
import functools

import jax
import jax.numpy as jnp
from jax.experimental import pallas as pl
from jax.experimental.pallas import tpu as pltpu


def _video_emo_loss_kernel(
    x_in_ref,     # (B, TT, D)  "input"  emotion features tile (any float dtype)
    x_out_ref,    # (B, TT, D)  "output" emotion features tile
    mask_ref,     # (B, TT)     multiplicative mask tile (f32, 1.0 = keep)
    w_ref,        # (D, H)      sequence-encoder projection weight
    b_ref,        # (1, H)      sequence-encoder projection bias
    wc_ref,       # (H, C)      classifier weight
    bc_ref,       # (1, C)      classifier bias
    pooled_ref,   # out (2B, H) rows [0:B]=input branch, [B:2B]=output branch
    logits_ref,   # out (2B, C)
    ps_ref,       # scratch VMEM (2B, D) f32 — stacked masked temporal sums
    *,
    inv_t,        # python float, 1 / T_orig (mean over ALL frames, as in ref)
):
    t = pl.program_id(0)
    b_rows = mask_ref.shape[0]

    @pl.when(t == 0)
    def _init():
        ps_ref[...] = jnp.zeros_like(ps_ref)

    # VPU mask-multiply + XLU sublane reduction over the time tile; both
    # branches accumulate into the stacked (2B, D) scratch (f32 accumulation).
    mask3 = mask_ref[...][:, :, None]                              # (B, TT, 1)
    x_in = x_in_ref[...].astype(jnp.float32)                       # (B, TT, D)
    x_out = x_out_ref[...].astype(jnp.float32)
    ps_ref[0:b_rows, :] += jnp.sum(x_in * mask3, axis=1)
    ps_ref[b_rows:2 * b_rows, :] += jnp.sum(x_out * mask3, axis=1)

    @pl.when(t == pl.num_programs(0) - 1)
    def _finalize():
        pooled_x = ps_ref[...] * inv_t                             # (2B, D)
        # One MXU matmul per projection for BOTH branches; bias once, post-pool.
        h = jnp.dot(pooled_x, w_ref[...].astype(jnp.float32),
                    preferred_element_type=jnp.float32) + b_ref[...]       # (2B, H)
        logits = jnp.dot(h, wc_ref[...].astype(jnp.float32),
                         preferred_element_type=jnp.float32) + bc_ref[...]  # (2B, C)
        pooled_ref[...] = h
        logits_ref[...] = logits


def _pick_time_tile(T):
    """Tile size over T obeying the (8,128) BlockSpec rule on both the
    (B, TT, D) activation tiles (TT is the sublane dim) and the (B, TT)
    mask tile (TT is the lane dim)."""
    if T <= 128:
        return T, T            # single full tile
    tt = 128
    t_pad = ((T + tt - 1) // tt) * tt
    return tt, t_pad


class VideoEmotionRecognitionLoss:
    """JAX/Pallas port of inferno VideoEmotionRecognitionLoss.compute_loss.

    The VideoEmotionClassifier is a deterministic synthetic model:
    per-frame Linear(D->H) + temporal mean pooling + Linear(H->C) logits.
    The metric is MSE on the pooled sequence features.
    """

    def __init__(self, feat_dim, hidden_dim, num_classes, key):
        k1, k2, k3, k4 = jax.random.split(key, 4)
        s1 = 1.0 / jnp.sqrt(jnp.float32(feat_dim))
        s2 = 1.0 / jnp.sqrt(jnp.float32(hidden_dim))
        self.w = jax.random.normal(k1, (feat_dim, hidden_dim), jnp.float32) * s1
        self.b = jax.random.normal(k2, (1, hidden_dim), jnp.float32) * 0.01
        self.wc = jax.random.normal(k3, (hidden_dim, num_classes), jnp.float32) * s2
        self.bc = jax.random.normal(k4, (1, num_classes), jnp.float32) * 0.01
        self.hidden_dim = hidden_dim
        self.num_classes = num_classes

    def compute_loss(self, input_emotion_features, output_emotion_features,
                     mask=None, return_logits=False):
        B, T, D = input_emotion_features.shape
        H, C = self.hidden_dim, self.num_classes
        if mask is None:
            mask = jnp.ones((B, T), jnp.float32)
        else:
            mask = mask.reshape(B, T).astype(jnp.float32)

        tt, t_pad = _pick_time_tile(T)
        x_in, x_out = input_emotion_features, output_emotion_features
        if t_pad != T:
            # Padded frames carry mask=0, so they contribute nothing to the
            # masked sum; the mean still divides by the ORIGINAL T (as in ref).
            pad = t_pad - T
            x_in = jnp.pad(x_in, ((0, 0), (0, pad), (0, 0)))
            x_out = jnp.pad(x_out, ((0, 0), (0, pad), (0, 0)))
            mask = jnp.pad(mask, ((0, 0), (0, pad)))
        num_t = t_pad // tt

        kernel = functools.partial(_video_emo_loss_kernel, inv_t=1.0 / T)
        pooled, logits = pl.pallas_call(
            kernel,
            out_shape=(
                jax.ShapeDtypeStruct((2 * B, H), jnp.float32),
                jax.ShapeDtypeStruct((2 * B, C), jnp.float32),
            ),
            grid_spec=pltpu.PrefetchScalarGridSpec(
                num_scalar_prefetch=0,
                grid=(num_t,),
                in_specs=[
                    pl.BlockSpec((B, tt, D), lambda t: (0, t, 0)),   # x_in tile
                    pl.BlockSpec((B, tt, D), lambda t: (0, t, 0)),   # x_out tile
                    pl.BlockSpec((B, tt), lambda t: (0, t)),         # mask tile
                    pl.BlockSpec((D, H), lambda t: (0, 0)),          # w (resident)
                    pl.BlockSpec((1, H), lambda t: (0, 0)),          # b
                    pl.BlockSpec((H, C), lambda t: (0, 0)),          # wc
                    pl.BlockSpec((1, C), lambda t: (0, 0)),          # bc
                ],
                out_specs=[
                    pl.BlockSpec((2 * B, H), lambda t: (0, 0)),      # pooled
                    pl.BlockSpec((2 * B, C), lambda t: (0, 0)),      # logits
                ],
                scratch_shapes=[pltpu.VMEM((2 * B, D), jnp.float32)],
            ),
            compiler_params=pltpu.CompilerParams(
                dimension_semantics=("arbitrary",)),
        )(
            x_in,                         # kept in caller dtype (bf16 here)
            x_out,
            mask,
            self.w, self.b, self.wc, self.bc,
        )

        # torch.no_grad() on the "input" branch -> stop_gradient before the
        # metric, so (once a custom_vjp exists) no grad flows into it.
        # TODO(synk): pallas_call has no VJP here; training use needs a
        # custom_vjp with a backward kernel (grad w.r.t. output features only).
        pooled_in = jax.lax.stop_gradient(pooled[:B])
        pooled_out = pooled[B:]
        logits_in = jax.lax.stop_gradient(logits[:B])
        logits_out = logits[B:]

        diff = pooled_in - pooled_out
        loss = jnp.mean(diff * diff)     # metric == MSE on pooled features
        if return_logits:
            return loss, logits_in, logits_out
        return loss


if __name__ == "__main__":
    key = jax.random.PRNGKey(0)

    def reference(loss_mod, x_in, x_out, mask):
        def ref_encode(x):
            xm = x.astype(jnp.float32) * mask[:, :, None]
            h = jnp.einsum("btd,dh->bth", xm, loss_mod.w) + loss_mod.b[None]
            pooled = jnp.mean(h, axis=1)
            return pooled, pooled @ loss_mod.wc + loss_mod.bc
        p_in, l_in = ref_encode(x_in)
        p_out, l_out = ref_encode(x_out)
        return jnp.mean((p_in - p_out) ** 2), l_in, l_out

    # --- Primary check: small shapes, single time tile (grid of 1). ---------
    B, T, D, H, C = 2, 8, 32, 32, 8
    k_in, k_out, k_mask, k_params = jax.random.split(key, 4)
    x_in = jax.random.normal(k_in, (B, T, D), jnp.float32).astype(jnp.bfloat16)
    x_out = jax.random.normal(k_out, (B, T, D), jnp.float32).astype(jnp.bfloat16)
    mask = (jax.random.uniform(k_mask, (B, T)) > 0.2).astype(jnp.float32)

    # TODO(synk): the optional image feature_extractor ('emo_feat_2' backbone)
    # is not modeled; we exercise the emotion_features code path of forward().
    loss_mod = VideoEmotionRecognitionLoss(D, H, C, k_params)

    loss, in_logits, out_logits = loss_mod.compute_loss(
        x_in, x_out, mask=mask, return_logits=True)
    jax.block_until_ready((loss, in_logits, out_logits))

    ref_loss, l_in, l_out = reference(loss_mod, x_in, x_out, mask)
    assert jnp.allclose(loss, ref_loss, rtol=1e-4, atol=1e-4), (loss, ref_loss)
    assert jnp.allclose(in_logits, l_in, rtol=1e-4, atol=1e-3)
    assert jnp.allclose(out_logits, l_out, rtol=1e-4, atol=1e-3)

    # --- Secondary check: longer clip exercising the T-grid + padding. ------
    T2 = 200   # -> tile 128, padded to 256, 2 grid steps with accumulation
    k_in2, k_out2, k_mask2 = jax.random.split(jax.random.PRNGKey(1), 3)
    x_in2 = jax.random.normal(k_in2, (B, T2, D), jnp.float32).astype(jnp.bfloat16)
    x_out2 = jax.random.normal(k_out2, (B, T2, D), jnp.float32).astype(jnp.bfloat16)
    mask2 = (jax.random.uniform(k_mask2, (B, T2)) > 0.2).astype(jnp.float32)

    loss2, in_logits2, out_logits2 = loss_mod.compute_loss(
        x_in2, x_out2, mask=mask2, return_logits=True)
    jax.block_until_ready((loss2, in_logits2, out_logits2))

    ref_loss2, l_in2, l_out2 = reference(loss_mod, x_in2, x_out2, mask2)
    assert jnp.allclose(loss2, ref_loss2, rtol=1e-4, atol=1e-4), (loss2, ref_loss2)
    assert jnp.allclose(in_logits2, l_in2, rtol=1e-4, atol=1e-3)
    assert jnp.allclose(out_logits2, l_out2, rtol=1e-4, atol=1e-3)

    print("KERNEL_OK")
</pallas_src>

<mosaic_0001>
module attributes {stable_mosaic.version = 11 : i64} {
  func.func @_video_emo_loss_kernel(%arg0: i32, %arg1: memref<2x8x32xbf16, #tpu.memory_space<vmem>>, %arg2: memref<2x8x32xbf16, #tpu.memory_space<vmem>>, %arg3: memref<2x8xf32, #tpu.memory_space<vmem>>, %arg4: memref<32x32xf32, #tpu.memory_space<vmem>>, %arg5: memref<1x32xf32, #tpu.memory_space<vmem>>, %arg6: memref<32x8xf32, #tpu.memory_space<vmem>>, %arg7: memref<1x8xf32, #tpu.memory_space<vmem>>, %arg8: memref<4x32xf32, #tpu.memory_space<vmem>>, %arg9: memref<4x8xf32, #tpu.memory_space<vmem>>, %arg10: memref<4x32xf32, #tpu.memory_space<vmem>>) attributes {dimension_semantics = [#tpu.dimension_semantics<arbitrary>], iteration_bounds = array<i64: 1>, scalar_prefetch = 0 : i64, scratch_operands = 1 : i64, tpu.core_type = #tpu.core_type<tc>, window_params = [{transform_indices = @transform_0, window_bounds = array<i64: 2, 8, 32>}, {transform_indices = @transform_1, window_bounds = array<i64: 2, 8, 32>}, {transform_indices = @transform_2, window_bounds = array<i64: 2, 8>}, {pipeline_mode = #tpu.pipeline_mode<synchronous>, transform_indices = @transform_3, window_bounds = array<i64: 32, 32>}, {pipeline_mode = #tpu.pipeline_mode<synchronous>, transform_indices = @transform_4, window_bounds = array<i64: 1, 32>}, {pipeline_mode = #tpu.pipeline_mode<synchronous>, transform_indices = @transform_5, window_bounds = array<i64: 32, 8>}, {pipeline_mode = #tpu.pipeline_mode<synchronous>, transform_indices = @transform_6, window_bounds = array<i64: 1, 8>}, {pipeline_mode = #tpu.pipeline_mode<synchronous>, transform_indices = @transform_7, window_bounds = array<i64: 4, 32>}, {pipeline_mode = #tpu.pipeline_mode<synchronous>, transform_indices = @transform_8, window_bounds = array<i64: 4, 8>}]} {
    %c0_i32 = arith.constant 0 : i32
    %0 = arith.cmpi eq, %arg0, %c0_i32 : i32
    %1 = arith.extui %0 : i1 to i32
    %c0_i32_0 = arith.constant 0 : i32
    %2 = arith.cmpi ne, %1, %c0_i32_0 : i32
    scf.if %2 {
      %cst_18 = arith.constant 0.000000e+00 : f32
      %24 = vector.broadcast %cst_18 : f32 to vector<4x32xf32>
      %c0_19 = arith.constant 0 : index
      %c0_20 = arith.constant 0 : index
      %25 = vector.load %arg10[%c0_19, %c0_20] : memref<4x32xf32, #tpu.memory_space<vmem>>, vector<4x32xf32>
      tpu.vector_store %arg10[%c0_19, %c0_20], %24 {strides = array<i32>} : memref<4x32xf32, #tpu.memory_space<vmem>>, vector<4x32xf32>,
    } else {
    }
    %c0 = arith.constant 0 : index
    %c0_1 = arith.constant 0 : index
    %3 = vector.load %arg3[%c0, %c0_1] : memref<2x8xf32, #tpu.memory_space<vmem>>, vector<2x8xf32>
    %4 = vector.shape_cast %3 : vector<2x8xf32> to vector<2x8x1xf32>
    %c0_2 = arith.constant 0 : index
    %c0_3 = arith.constant 0 : index
    %c0_4 = arith.constant 0 : index
    %5 = vector.load %arg1[%c0_2, %c0_3, %c0_4] : memref<2x8x32xbf16, #tpu.memory_space<vmem>>, vector<2x8x32xbf16>
    %6 = arith.extf %5 : vector<2x8x32xbf16> to vector<2x8x32xf32>
    %c0_5 = arith.constant 0 : index
    %c0_6 = arith.constant 0 : index
    %c0_7 = arith.constant 0 : index
    %7 = vector.load %arg2[%c0_5, %c0_6, %c0_7] : memref<2x8x32xbf16, #tpu.memory_space<vmem>>, vector<2x8x32xbf16>
    %8 = arith.extf %7 : vector<2x8x32xbf16> to vector<2x8x32xf32>
    %c0_8 = arith.constant 0 : index
    %c0_9 = arith.constant 0 : index
    %9 = vector.load %arg10[%c0_8, %c0_9] : memref<4x32xf32, #tpu.memory_space<vmem>>, vector<2x32xf32>
    %10 = vector.broadcast %4 : vector<2x8x1xf32> to vector<2x8x32xf32>
    %11 = arith.mulf %6, %10 : vector<2x8x32xf32>
    %cst = arith.constant dense<0.000000e+00> : vector<2x32xf32>
    %12 = vector.multi_reduction <add>, %11, %cst [1] : vector<2x8x32xf32> to vector<2x32xf32>
    %13 = arith.addf %9, %12 : vector<2x32xf32>
    %c0_10 = arith.constant 0 : index
    %c0_11 = arith.constant 0 : index
    %14 = vector.load %arg10[%c0_10, %c0_11] : memref<4x32xf32, #tpu.memory_space<vmem>>, vector<2x32xf32>
    tpu.vector_store %arg10[%c0_10, %c0_11], %13 {strides = array<i32>} : memref<4x32xf32, #tpu.memory_space<vmem>>, vector<2x32xf32>,
    %c2 = arith.constant 2 : index
    %c0_12 = arith.constant 0 : index
    %15 = vector.load %arg10[%c2, %c0_12] : memref<4x32xf32, #tpu.memory_space<vmem>>, vector<2x32xf32>
    %16 = vector.broadcast %4 : vector<2x8x1xf32> to vector<2x8x32xf32>
    %17 = arith.mulf %8, %16 : vector<2x8x32xf32>
    %cst_13 = arith.constant dense<0.000000e+00> : vector<2x32xf32>
    %18 = vector.multi_reduction <add>, %17, %cst_13 [1] : vector<2x8x32xf32> to vector<2x32xf32>
    %19 = arith.addf %15, %18 : vector<2x32xf32>
    %c2_14 = arith.constant 2 : index
    %c0_15 = arith.constant 0 : index
    %20 = vector.load %arg10[%c2_14, %c0_15] : memref<4x32xf32, #tpu.memory_space<vmem>>, vector<2x32xf32>
    tpu.vector_store %arg10[%c2_14, %c0_15], %19 {strides = array<i32>} : memref<4x32xf32, #tpu.memory_space<vmem>>, vector<2x32xf32>,
    %c0_i32_16 = arith.constant 0 : i32
    %21 = arith.cmpi eq, %arg0, %c0_i32_16 : i32
    %22 = arith.extui %21 : i1 to i32
    %c0_i32_17 = arith.constant 0 : i32
    %23 = arith.cmpi ne, %22, %c0_i32_17 : i32
    scf.if %23 {
      %c0_18 = arith.constant 0 : index
      %c0_19 = arith.constant 0 : index
      %24 = vector.load %arg10[%c0_18, %c0_19] : memref<4x32xf32, #tpu.memory_space<vmem>>, vector<4x32xf32>
      %cst_20 = arith.constant 1.250000e-01 : f32
      %25 = vector.broadcast %cst_20 : f32 to vector<4x32xf32>
      %26 = arith.mulf %24, %25 : vector<4x32xf32>
      %c0_21 = arith.constant 0 : index
      %c0_22 = arith.constant 0 : index
      %27 = vector.load %arg4[%c0_21, %c0_22] : memref<32x32xf32, #tpu.memory_space<vmem>>, vector<32x32xf32>
      %cst_23 = arith.constant dense<0.000000e+00> : vector<4x32xf32>
      %28 = tpu.matmul %26, %27, %cst_23 {dimension_numbers = #tpu.dot_dimension_numbers<[1], [0], [0], [1], [0, 0, 1, 1], [], []>} : vector<4x32xf32>, vector<32x32xf32>, vector<4x32xf32> -> vector<4x32xf32>
      %c0_24 = arith.constant 0 : index
      %c0_25 = arith.constant 0 : index
      %29 = vector.load %arg5[%c0_24, %c0_25] : memref<1x32xf32, #tpu.memory_space<vmem>>, vector<1x32xf32>
      %30 = vector.broadcast %29 : vector<1x32xf32> to vector<4x32xf32>
      %31 = arith.addf %28, %30 : vector<4x32xf32>
      %c0_26 = arith.constant 0 : index
      %c0_27 = arith.constant 0 : index
      %32 = vector.load %arg6[%c0_26, %c0_27] : memref<32x8xf32, #tpu.memory_space<vmem>>, vector<32x8xf32>
      %cst_28 = arith.constant dense<0.000000e+00> : vector<4x8xf32>
      %33 = tpu.matmul %31, %32, %cst_28 {dimension_numbers = #tpu.dot_dimension_numbers<[1], [0], [0], [1], [0, 0, 1, 1], [], []>} : vector<4x32xf32>, vector<32x8xf32>, vector<4x8xf32> -> vector<4x8xf32>
      %c0_29 = arith.constant 0 : index
      %c0_30 = arith.constant 0 : index
      %34 = vector.load %arg7[%c0_29, %c0_30] : memref<1x8xf32, #tpu.memory_space<vmem>>, vector<1x8xf32>
      %35 = vector.broadcast %34 : vector<1x8xf32> to vector<4x8xf32>
      %36 = arith.addf %33, %35 : vector<4x8xf32>
      %c0_31 = arith.constant 0 : index
      %c0_32 = arith.constant 0 : index
      %37 = vector.load %arg8[%c0_31, %c0_32] : memref<4x32xf32, #tpu.memory_space<vmem>>, vector<4x32xf32>
      tpu.vector_store %arg8[%c0_31, %c0_32], %31 {strides = array<i32>} : memref<4x32xf32, #tpu.memory_space<vmem>>, vector<4x32xf32>,
      %c0_33 = arith.constant 0 : index
      %c0_34 = arith.constant 0 : index
      %38 = vector.load %arg9[%c0_33, %c0_34] : memref<4x8xf32, #tpu.memory_space<vmem>>, vector<4x8xf32>
      tpu.vector_store %arg9[%c0_33, %c0_34], %36 {strides = array<i32>} : memref<4x8xf32, #tpu.memory_space<vmem>>, vector<4x8xf32>,
    } else {
    }
    return
  }
  func.func @transform_0(%arg0: i32) -> (i32, i32, i32) {
    %c0_i32 = arith.constant 0 : i32
    %c0_i32_0 = arith.constant 0 : i32
    %c0_i32_1 = arith.constant 0 : i32
    return %c0_i32, %arg0, %c0_i32_0 : i32, i32, i32
  }
  func.func @transform_1(%arg0: i32) -> (i32, i32, i32) {
    %c0_i32 = arith.constant 0 : i32
    %c0_i32_0 = arith.constant 0 : i32
    %c0_i32_1 = arith.constant 0 : i32
    return %c0_i32, %arg0, %c0_i32_0 : i32, i32, i32
  }
  func.func @transform_2(%arg0: i32) -> (i32, i32) {
    %c0_i32 = arith.constant 0 : i32
    %c0_i32_0 = arith.constant 0 : i32
    return %c0_i32, %arg0 : i32, i32
  }
  func.func @transform_3(%arg0: i32) -> (i32, i32) {
    %c0_i32 = arith.constant 0 : i32
    %c0_i32_0 = arith.constant 0 : i32
    %c0_i32_1 = arith.constant 0 : i32
    return %c0_i32, %c0_i32_0 : i32, i32
  }
  func.func @transform_4(%arg0: i32) -> (i32, i32) {
    %c0_i32 = arith.constant 0 : i32
    %c0_i32_0 = arith.constant 0 : i32
    %c0_i32_1 = arith.constant 0 : i32
    return %c0_i32, %c0_i32_0 : i32, i32
  }
  func.func @transform_5(%arg0: i32) -> (i32, i32) {
    %c0_i32 = arith.constant 0 : i32
    %c0_i32_0 = arith.constant 0 : i32
    %c0_i32_1 = arith.constant 0 : i32
    return %c0_i32, %c0_i32_0 : i32, i32
  }
  func.func @transform_6(%arg0: i32) -> (i32, i32) {
    %c0_i32 = arith.constant 0 : i32
    %c0_i32_0 = arith.constant 0 : i32
    %c0_i32_1 = arith.constant 0 : i32
    return %c0_i32, %c0_i32_0 : i32, i32
  }
  func.func @transform_7(%arg0: i32) -> (i32, i32) {
    %c0_i32 = arith.constant 0 : i32
    %c0_i32_0 = arith.constant 0 : i32
    %c0_i32_1 = arith.constant 0 : i32
    return %c0_i32, %c0_i32_0 : i32, i32
  }
  func.func @transform_8(%arg0: i32) -> (i32, i32) {
    %c0_i32 = arith.constant 0 : i32
    %c0_i32_0 = arith.constant 0 : i32
    %c0_i32_1 = arith.constant 0 : i32
    return %c0_i32, %c0_i32_0 : i32, i32
  }
}

</mosaic_0001>

<llo_original>
// kernel: tpu_custom_call.1
$region0: #{tpu_custom_call.1}
  #allocation0 [shape = 'u32[]', space=smem, size = 0x4, offset = 0x4, fixed_abs, tag = 'smem constant byte address 0x4 - core index']
  #allocation1 [shape = 'u32[144,128]{1,0:T(1,128)}', space=vmem, size = 0x12000, scoped, tag = 'internal scratch']
  #allocation2 [shape = 'f32[4,32]{1,0:T(4,128)}', space=vmem, size = 0x800, scoped, tag = 'scratch operand']
  %s0 = inlined_call_operand.vmem [shape: bf16[2,8,32], index: 0, kind: input, shape index: {}]
  %s1 = inlined_call_operand.hbm [shape: bf16[2,8,32], index: 1, kind: input, shape index: {}]
  %s2 = inlined_call_operand.hbm [shape: f32[2,8], index: 2, kind: input, shape index: {}]
  %s3 = inlined_call_operand.vmem [shape: f32[32,32], index: 3, kind: input, shape index: {}]
  %s4 = inlined_call_operand.vmem [shape: f32[1,32], index: 4, kind: input, shape index: {}]
  %s5 = inlined_call_operand.vmem [shape: f32[32,8], index: 5, kind: input, shape index: {}]
  %s6 = inlined_call_operand.vmem [shape: f32[1,8], index: 6, kind: input, shape index: {}]
  %s7 = inlined_call_operand.hbm [shape: f32[4,32], index: 7, kind: output, shape index: {0}]
  %s8 = inlined_call_operand.hbm [shape: f32[4,8], index: 8, kind: output, shape index: {1}]
  %9 = xla_tuple %s7, %s8
  %s10 = sld [smem:[#allocation0]]
  $region62: #{tpu_custom_call.1} parent=0
    _
  %s12 = ssub.s32 1, %s10
  %s13 = scalar_select 0, %s12, %s10
  $region1: #{tpu_custom_call.1} parent=0
    #allocation3 [shape = 'u8[4096]{0}', space=vmem, size = 0x1000, scoped, tag = 'input window, operand 1, single buffered']
    #allocation4 [shape = 's32[1]{0}', space=sflag, size = 0x4, scoped, tag = 'scoped memory for tpu_custom_call.1']
    #allocation5 [shape = 's32[1]{0}', space=sflag, size = 0x4, scoped, tag = 'scoped memory for tpu_custom_call.1']
    #allocation6 [shape = 'u8[1024]{0}', space=vmem, size = 0x400, scoped, tag = 'input window, operand 2, single buffered']
    #allocation7 [shape = 's32[1]{0}', space=sflag, size = 0x4, scoped, tag = 'scoped memory for tpu_custom_call.1']
    #allocation8 [shape = 'u8[2048]{0}', space=vmem, size = 0x800, scoped, tag = 'output window, operand 0, single buffered']
    #allocation9 [shape = 'u8[2048]{0}', space=vmem, size = 0x800, scoped, tag = 'output window, operand 1, single buffered']
    #allocation10 [shape = 's32[1]{0}', space=sflag, size = 0x4, scoped, tag = 'scoped memory for tpu_custom_call.1']
    %14 = vsyncpa [#allocation4], 0
    %15 = vsyncpa [#allocation7], 0
    %16 = vsyncpa [#allocation5], 0
    %17 = vsyncpa [#allocation10], 0
    // Predicated region
    $region2: #{tpu_custom_call.1} parent=1 // pred_check
      _
    $region3: #{tpu_custom_call.1} parent=1 // pred_check_branch
      %19 = sbr.rel (0) target = $region5
    $region4: #{tpu_custom_call.1} parent=1 // pred_region
      _
    $region5: #{tpu_custom_call.1} parent=1 // pred_fallthru
      _
    // Predicated region
    $region6: #{tpu_custom_call.1} parent=1 // pred_check
      _
    $region7: #{tpu_custom_call.1} parent=1 // pred_check_branch
      %21 = sbr.rel (0) target = $region9
    $region8: #{tpu_custom_call.1} parent=1 // pred_region
      %s23 = ssub.s32 128, 128
      %24 = vsyncadd [#allocation4], %s23
      %s25 = sshll.u32 [#allocation3], 4
      %s26 = int_to_ptr.vmem [resolvable:$true] %s25
      %31 = dma.hbm_to_vmem [thread:$0]  %s1, 128, %s26, [#allocation4], 64, 64, 4
    $region9: #{tpu_custom_call.1} parent=1 // pred_fallthru
      _
    // Predicated region
    $region10: #{tpu_custom_call.1} parent=1 // pred_check
      _
    $region11: #{tpu_custom_call.1} parent=1 // pred_check_branch
      %33 = sbr.rel (0) target = $region13
    $region12: #{tpu_custom_call.1} parent=1 // pred_region
      %s35 = ssub.s32 32, 32
      %36 = vsyncadd [#allocation7], %s35
      %s38 = sshll.u32 [#allocation6], 4
      %s39 = int_to_ptr.vmem [resolvable:$true] %s38
      %41 = dma.hbm_to_vmem [thread:$0]  %s2, 32, %s39, [#allocation7]
    $region13: #{tpu_custom_call.1} parent=1 // pred_fallthru
      _
    // Predicated region
    $region14: #{tpu_custom_call.1} parent=1 // pred_check
      _
    $region15: #{tpu_custom_call.1} parent=1 // pred_check_branch
      %43 = sbr.rel (0) target = $region17
    $region16: #{tpu_custom_call.1} parent=1 // pred_region
      _
    $region17: #{tpu_custom_call.1} parent=1 // pred_fallthru
      _
    // Predicated region
    $region18: #{tpu_custom_call.1} parent=1 // pred_check
      _
    $region19: #{tpu_custom_call.1} parent=1 // pred_check_branch
      %45 = sbr.rel (0) target = $region21
    $region20: #{tpu_custom_call.1} parent=1 // pred_region
      _
    $region21: #{tpu_custom_call.1} parent=1 // pred_fallthru
      _
    // Predicated region
    $region22: #{tpu_custom_call.1} parent=1 // pred_check
      _
    $region23: #{tpu_custom_call.1} parent=1 // pred_check_branch
      %47 = sbr.rel (0) target = $region25
    $region24: #{tpu_custom_call.1} parent=1 // pred_region
      _
    $region25: #{tpu_custom_call.1} parent=1 // pred_fallthru
      _
    // Predicated region
    $region26: #{tpu_custom_call.1} parent=1 // pred_check
      _
    $region27: #{tpu_custom_call.1} parent=1 // pred_check_branch
      %49 = sbr.rel (0) target = $region29
    $region28: #{tpu_custom_call.1} parent=1 // pred_region
      _
    $region29: #{tpu_custom_call.1} parent=1 // pred_fallthru
      _
    // Predicated region
    $region30: #{tpu_custom_call.1} parent=1 // pred_check
      _
    $region31: #{tpu_custom_call.1} parent=1 // pred_check_branch
      %51 = sbr.rel (0) target = $region33
    $region32: #{tpu_custom_call.1} parent=1 // pred_region
      %52 = dma.done [#allocation4], 128
    $region33: #{tpu_custom_call.1} parent=1 // pred_fallthru
      _
    // Predicated region
    $region34: #{tpu_custom_call.1} parent=1 // pred_check
      _
    $region35: #{tpu_custom_call.1} parent=1 // pred_check_branch
      %54 = sbr.rel (0) target = $region37
    $region36: #{tpu_custom_call.1} parent=1 // pred_region
      %55 = dma.done [#allocation7], 32
    $region37: #{tpu_custom_call.1} parent=1 // pred_fallthru
      _
    %p56 = scmp.eq.s32.totalorder 0, 0
    // Predicated region
    $region38: #{tpu_custom_call.1} parent=1 // pred_check
      %p57 = pneg %p56
    $region39: #{tpu_custom_call.1} parent=1 // pred_check_branch
      %59 = sbr.rel (%p57) target = $region41
    $region40: #{tpu_custom_call.1} parent=1 // pred_region
      %vm60 = vcmask 257024
      %61 = vst.msk [vmem:[#allocation2] sm:$0xf] %vm60, 0.0
    $region41: #{tpu_custom_call.1} parent=1 // pred_fallthru
      _
    %v62 = vld [vmem:[#allocation6] sm:$0x3]
    %v63 = vlaneseq
    %v64 = vshrl.u32 %v63, 7
    %v65 = vsub.s32 0, %v64
    %v66 = vrot.slane %v62, %v65
    %68 = vbcast.lane.b32.xlu0 %v66, 256
    %v69 = vpop.permute.xlu0 %68
    %v70 = vlaneseq
    %v71 = vshrl.u32 %v70, 7
    %v72 = vsub.s32 1, %v71
    %v73 = vrot.slane %v62, %v72
    %75 = vbcast.lane.b32.xlu0 %v73, 256
    %v76 = vpop.permute.xlu0 %75
    %v77 = vld [vmem:[%s0] sm:$0xf]
    %v78 = vld [vmem:[%s0 + $0x4] sm:$0xf]
    %v79 = vunpack.c.l.bf16 %v77
    %v80 = vunpack.c.l.bf16 %v78
    %v81 = vld [vmem:[#allocation3] sm:$0xf]
    %v82 = vld [vmem:[#allocation3 + $0x4] sm:$0xf]
    %v83 = vunpack.c.l.bf16 %v81
    %v84 = vunpack.c.l.bf16 %v82
    %v85 = vld [vmem:[#allocation2] sm:$0x3]
    %v86 = vmul.f32 %v79, %v69
    %v87 = vmul.f32 %v80, %v76
    %vm88 = vcmask 261120
    %v89 = vsel %vm88, %v86, 0.0
    %v90 = vrot.slane %v89, 4
    %v91 = vadd.f32 %v89, %v90
    %v92 = vrot.slane %v91, 2
    %v93 = vadd.f32 %v91, %v92
    %v94 = vrot.slane %v93, 1
    %v95 = vadd.f32 %v93, %v94
    %v96 = vsel %vm88, %v87, 0.0
    %v97 = vrot.slane %v96, 4
    %v98 = vadd.f32 %v96, %v97
    %v99 = vrot.slane %v98, 2
    %v100 = vadd.f32 %v98, %v99
    %v101 = vrot.slane %v100, 1
    %v102 = vadd.f32 %v100, %v101
    %vm105 = vcmask 1041409
    %v106 = vsel %vm105, %v102, %v95
    %v108 = vadd.f32 %v85, %v106
    %vm109 = vcmask 254976
    %110 = vst.msk [vmem:[#allocation2] sm:$0x3] %vm109, %v108
    %v111 = vld [vmem:[#allocation2 + $0x2] sm:$0x3]
    %v112 = vmul.f32 %v83, %v69
    %v113 = vmul.f32 %v84, %v76
    %v114 = vsel %vm88, %v112, 0.0
    %v115 = vrot.slane %v114, 4
    %v116 = vadd.f32 %v114, %v115
    %v117 = vrot.slane %v116, 2
    %v118 = vadd.f32 %v116, %v117
    %v119 = vrot.slane %v118, 1
    %v120 = vadd.f32 %v118, %v119
    %v121 = vsel %vm88, %v113, 0.0
    %v122 = vrot.slane %v121, 4
    %v123 = vadd.f32 %v121, %v122
    %v124 = vrot.slane %v123, 2
    %v125 = vadd.f32 %v123, %v124
    %v126 = vrot.slane %v125, 1
    %v127 = vadd.f32 %v125, %v126
    %v130 = vsel %vm105, %v127, %v120
    %v132 = vadd.f32 %v111, %v130
    %133 = vst.msk [vmem:[#allocation2 + $0x2] sm:$0x3] %vm109, %v132
    // Predicated region
    $region42: #{tpu_custom_call.1} parent=1 // pred_check
      %p134 = pneg %p56
    $region43: #{tpu_custom_call.1} parent=1 // pred_check_branch
      %136 = sbr.rel (%p134) target = $region45
    $region44: #{tpu_custom_call.1} parent=1 // pred_region
      %v137 = vld [vmem:[#allocation2] sm:$0xf]
      %v138 = vmul.f32 %v137, 0.125
      %v139 = vld [vmem:[%s3] sm:$0xff]
      %v140 = vld [vmem:[%s3 + $0x8] sm:$0xff]
      %v141 = vld [vmem:[%s3 + $0x10] sm:$0xff]
      %v142 = vld [vmem:[%s3 + $0x18] sm:$0xff]
      %v143 = vld [vmem:[%s4] sm:$0x1]
      %v145 = vlaneseq
      %v146 = vshrl.u32 %v145, 7
      %v147 = vsub.s32 0, %v146
      %v148 = vrot.slane %v143, %v147
      %v151 = vsel %vm88, %v138, 0
      %153 = vmatprep.subr.mxu0 0.0
      %154 = vmatpush1.msra.mxu0 0.0
      %155 = vmatprep.subr.mxu0 0.0
      %156 = vmatpush1.msra.mxu0 0.0
      %157 = vmatprep.subr.mxu0 0.0
      %158 = vmatpush1.msra.mxu0 0.0
      %159 = vmatprep.subr.mxu0 0.0
      %160 = vmatpush1.msra.mxu0 0.0
      %161 = vmatprep.subr.mxu0 0.0
      %162 = vmatpush1.msra.mxu0 0.0
      %163 = vmatprep.subr.mxu0 0.0
      %164 = vmatpush1.msra.mxu0 0.0
      %165 = vmatprep.subr.mxu0 0.0
      %166 = vmatpush1.msra.mxu0 0.0
      %167 = vmatprep.subr.mxu0 0.0
      %168 = vmatpush1.msra.mxu0 0.0
      %169 = vmatprep.subr.mxu0 0.0
      %170 = vmatpush1.msra.mxu0 0.0
      %171 = vmatprep.subr.mxu0 0.0
      %172 = vmatpush1.msra.mxu0 0.0
      %173 = vmatprep.subr.mxu0 0.0
      %174 = vmatpush1.msra.mxu0 0.0
      %175 = vmatprep.subr.mxu0 0.0
      %176 = vmatpush1.msra.mxu0 0.0
      %177 = vmatprep.subr.mxu0 0.0
      %178 = vmatpush1.msra.mxu0 %v142
      %179 = vmatprep.subr.mxu0 0.0
      %180 = vmatpush1.msra.mxu0 %v141
      %181 = vmatprep.subr.mxu0 0.0
      %182 = vmatpush1.msra.mxu0 %v140
      %183 = vmatprep.subr.mxu0 0.0
      %184 = vmatpush1.msra.mxu0 %v139
      %185 = vmatprep.subr.mxu0 0.0
      %186 = vmatpush2.msra.mxu0 0.0
      %187 = vmatprep.subr.mxu0 0.0
      %188 = vmatpush2.msra.mxu0 0.0
      %189 = vmatprep.subr.mxu0 0.0
      %190 = vmatpush2.msra.mxu0 0.0
      %191 = vmatprep.subr.mxu0 0.0
      %192 = vmatpush2.msra.mxu0 0.0
      %193 = vmatprep.subr.mxu0 0.0
      %194 = vmatpush2.msra.mxu0 0.0
      %195 = vmatprep.subr.mxu0 0.0
      %196 = vmatpush2.msra.mxu0 0.0
      %197 = vmatprep.subr.mxu0 0.0
      %198 = vmatpush2.msra.mxu0 0.0
      %199 = vmatprep.subr.mxu0 0.0
      %200 = vmatpush2.msra.mxu0 0.0
      %201 = vmatprep.subr.mxu0 0.0
      %202 = vmatpush2.msra.mxu0 0.0
      %203 = vmatprep.subr.mxu0 0.0
      %204 = vmatpush2.msra.mxu0 0.0
      %205 = vmatprep.subr.mxu0 0.0
      %206 = vmatpush2.msra.mxu0 0.0
      %207 = vmatprep.subr.mxu0 0.0
      %208 = vmatpush2.msra.mxu0 0.0
      %209 = vmatprep.subr.mxu0 0.0
      %210 = vmatpush2.msra.mxu0 0.0
      %211 = vmatprep.subr.mxu0 0.0
      %212 = vmatpush2.msra.mxu0 0.0
      %213 = vmatprep.subr.mxu0 0.0
      %214 = vmatpush2.msra.mxu0 0.0
      %215 = vmatprep.subr.mxu0 0.0
      %216 = vmatpush2.msra.mxu0 0.0
      %217 = vmatprep.mubr.f32.mxu0 0.0
      %218 = vmatmul.mubr.f32.gmra.mxu0 %v151
      %v219 = vpop.f32.mrf.mxu0
      %v220 = vadd.f32 %v148, %v219
      %v221 = vpop.f32.mrf.mxu0
      %222 = vdwg.mxu0
      %v223 = vld [vmem:[%s5] sm:$0xff]
      %v224 = vld [vmem:[%s5 + $0x8] sm:$0xff]
      %v225 = vld [vmem:[%s5 + $0x10] sm:$0xff]
      %v226 = vld [vmem:[%s5 + $0x18] sm:$0xff]
      %v227 = vld [vmem:[%s6] sm:$0x1]
      %v229 = vlaneseq
      %v230 = vshrl.u32 %v229, 7
      %v231 = vsub.s32 0, %v230
      %v232 = vrot.slane %v227, %v231
      %v235 = vsel %vm88, %v220, 0
      %237 = vmatprep.subr.mxu0 0.0
      %238 = vmatpush1.msra.mxu0 0.0
      %239 = vmatprep.subr.mxu0 0.0
      %240 = vmatpush1.msra.mxu0 0.0
      %241 = vmatprep.subr.mxu0 0.0
      %242 = vmatpush1.msra.mxu0 0.0
      %243 = vmatprep.subr.mxu0 0.0
      %244 = vmatpush1.msra.mxu0 0.0
      %245 = vmatprep.subr.mxu0 0.0
      %246 = vmatpush1.msra.mxu0 0.0
      %247 = vmatprep.subr.mxu0 0.0
      %248 = vmatpush1.msra.mxu0 0.0
      %249 = vmatprep.subr.mxu0 0.0
      %250 = vmatpush1.msra.mxu0 0.0
      %251 = vmatprep.subr.mxu0 0.0
      %252 = vmatpush1.msra.mxu0 0.0
      %253 = vmatprep.subr.mxu0 0.0
      %254 = vmatpush1.msra.mxu0 0.0
      %255 = vmatprep.subr.mxu0 0.0
      %256 = vmatpush1.msra.mxu0 0.0
      %257 = vmatprep.subr.mxu0 0.0
      %258 = vmatpush1.msra.mxu0 0.0
      %259 = vmatprep.subr.mxu0 0.0
      %260 = vmatpush1.msra.mxu0 0.0
      %261 = vmatprep.subr.mxu0 0.0
      %262 = vmatpush1.msra.mxu0 %v226
      %263 = vmatprep.subr.mxu0 0.0
      %264 = vmatpush1.msra.mxu0 %v225
      %265 = vmatprep.subr.mxu0 0.0
      %266 = vmatpush1.msra.mxu0 %v224
      %267 = vmatprep.subr.mxu0 0.0
      %268 = vmatpush1.msra.mxu0 %v223
      %269 = vmatprep.subr.mxu0 0.0
      %270 = vmatpush2.msra.mxu0 0.0
      %271 = vmatprep.subr.mxu0 0.0
      %272 = vmatpush2.msra.mxu0 0.0
      %273 = vmatprep.subr.mxu0 0.0
      %274 = vmatpush2.msra.mxu0 0.0
      %275 = vmatprep.subr.mxu0 0.0
      %276 = vmatpush2.msra.mxu0 0.0
      %277 = vmatprep.subr.mxu0 0.0
      %278 = vmatpush2.msra.mxu0 0.0
      %279 = vmatprep.subr.mxu0 0.0
      %280 = vmatpush2.msra.mxu0 0.0
      %281 = vmatprep.subr.mxu0 0.0
      %282 = vmatpush2.msra.mxu0 0.0
      %283 = vmatprep.subr.mxu0 0.0
      %284 = vmatpush2.msra.mxu0 0.0
      %285 = vmatprep.subr.mxu0 0.0
      %286 = vmatpush2.msra.mxu0 0.0
      %287 = vmatprep.subr.mxu0 0.0
      %288 = vmatpush2.msra.mxu0 0.0
      %289 = vmatprep.subr.mxu0 0.0
      %290 = vmatpush2.msra.mxu0 0.0
      %291 = vmatprep.subr.mxu0 0.0
      %292 = vmatpush2.msra.mxu0 0.0
      %293 = vmatprep.subr.mxu0 0.0
      %294 = vmatpush2.msra.mxu0 0.0
      %295 = vmatprep.subr.mxu0 0.0
      %296 = vmatpush2.msra.mxu0 0.0
      %297 = vmatprep.subr.mxu0 0.0
      %298 = vmatpush2.msra.mxu0 0.0
      %299 = vmatprep.subr.mxu0 0.0
      %300 = vmatpush2.msra.mxu0 0.0
      %301 = vmatprep.mubr.f32.mxu0 0.0
      %302 = vmatmul.mubr.f32.gmra.mxu0 %v235
      %v303 = vpop.f32.mrf.mxu0
      %v304 = vadd.f32 %v232, %v303
      %v305 = vpop.f32.mrf.mxu0
      %306 = vdwg.mxu0
      %vm307 = vcmask 257024
      %308 = vst.msk [vmem:[#allocation8] sm:$0xf] %vm307, %v220
      %vm309 = vcmask 60416
      %310 = vst.msk [vmem:[#allocation9] sm:$0xf] %vm309, %v304
    $region45: #{tpu_custom_call.1} parent=1 // pred_fallthru
      _
    // Predicated region
    $region46: #{tpu_custom_call.1} parent=1 // pred_check
      _
    $region47: #{tpu_custom_call.1} parent=1 // pred_check_branch
      %312 = sbr.rel (0) target = $region49
    $region48: #{tpu_custom_call.1} parent=1 // pred_region
      %s314 = ssub.s32 64, 64
      %315 = vsyncadd [#allocation5], %s314
      %s317 = sshll.u32 [#allocation8], 4
      %s318 = int_to_ptr.vmem [resolvable:$true] %s317
      %320 = dma.vmem_to_hbm [thread:$0]  %s318, 64, %s7, [#allocation5]
    $region49: #{tpu_custom_call.1} parent=1 // pred_fallthru
      _
    // Predicated region
    $region50: #{tpu_custom_call.1} parent=1 // pred_check
      _
    $region51: #{tpu_custom_call.1} parent=1 // pred_check_branch
      %322 = sbr.rel (0) target = $region53
    $region52: #{tpu_custom_call.1} parent=1 // pred_region
      %s324 = ssub.s32 64, 64
      %325 = vsyncadd [#allocation10], %s324
      %s327 = sshll.u32 [#allocation9], 4
      %s328 = int_to_ptr.vmem [resolvable:$true] %s327
      %330 = dma.vmem_to_hbm [thread:$0]  %s328, 64, %s8, [#allocation10]
    $region53: #{tpu_custom_call.1} parent=1 // pred_fallthru
      _
    // Predicated region
    $region54: #{tpu_custom_call.1} parent=1 // pred_check
      _
    $region55: #{tpu_custom_call.1} parent=1 // pred_check_branch
      %332 = sbr.rel (0) target = $region57
    $region56: #{tpu_custom_call.1} parent=1 // pred_region
      %333 = dma.done [#allocation5], 64
    $region57: #{tpu_custom_call.1} parent=1 // pred_fallthru
      _
    // Predicated region
    $region58: #{tpu_custom_call.1} parent=1 // pred_check
      _
    $region59: #{tpu_custom_call.1} parent=1 // pred_check_branch
      %335 = sbr.rel (0) target = $region61
    $region60: #{tpu_custom_call.1} parent=1 // pred_region
      %336 = dma.done [#allocation10], 64
    $region61: #{tpu_custom_call.1} parent=1 // pred_fallthru
      _
    %337 = vsyncpa [#allocation4], 1
    %338 = vsyncpa [#allocation7], 1
    %339 = vsyncpa [#allocation5], 1
    %340 = vsyncpa [#allocation10], 1

</llo_original>
